<compile_context>
chip_gen: v6e
topology: v6e:2x2x1
jax: 0.10.0
libtpu: 0.0.40
codegen_flags: <defaults>
</compile_context>

<pallas_src>
import functools

import jax
import jax.numpy as jnp
from jax.experimental import pallas as pl
from jax.experimental.pallas import tpu as pltpu


def _mlp_and_store(avg, mx, w1t_ref, b1_ref, w2t_ref, b2_ref, o_ref):
    """Fused fc2(relu(fc1(.))) over stacked [avg; max] rows + sigmoid + store."""
    nb = avg.shape[0]
    wdt = w1t_ref.dtype
    pooled = jnp.concatenate([avg, mx], axis=0)                       # (2*NB, C)
    h = jnp.dot(pooled.astype(wdt), w1t_ref[...],
                preferred_element_type=jnp.float32) + b1_ref[...]     # (2*NB, H1)
    h = jnp.maximum(h, 0.0)
    y = jnp.dot(h.astype(wdt), w2t_ref[...],
                preferred_element_type=jnp.float32) + b2_ref[...]     # (2*NB, C)
    out = jax.nn.sigmoid(y[:nb] + y[nb:])                             # (NB, C)
    o_ref[...] = out.astype(o_ref.dtype)


def _ca_single_tile_kernel(x_ref, w1t_ref, b1_ref, w2t_ref, b2_ref, o_ref, *,
                           hw_total):
    # Whole HW fits in one tile: no scratch, no accumulation grid axis.
    x = x_ref[...].astype(jnp.float32)             # (NB, C, HW), single load
    avg = jnp.sum(x, axis=-1) * (1.0 / hw_total)   # (NB, C)
    mx = jnp.max(x, axis=-1)                       # (NB, C)
    _mlp_and_store(avg, mx, w1t_ref, b1_ref, w2t_ref, b2_ref, o_ref)


def _ca_tiled_kernel(x_ref, w1t_ref, b1_ref, w2t_ref, b2_ref, o_ref,
                     sum_acc, max_acc, *, hw_total, hw_block, mask_tail):
    # x_ref:   (NB, C, THW)    one batch-block x spatial-tile
    # sum_acc / max_acc: (NB, C) f32 scratch, persistent across the HW grid axis.
    k = pl.program_id(1)
    last = pl.num_programs(1) - 1

    @pl.when(k == 0)
    def _init():
        sum_acc[...] = jnp.zeros_like(sum_acc)
        max_acc[...] = jnp.full_like(max_acc, -jnp.inf)

    x = x_ref[...].astype(jnp.float32)             # single load shared by sum & max

    if mask_tail:
        # Only the final tile pays for the iota + selects (perf review #1).
        @pl.when(k < last)
        def _acc_full():
            sum_acc[...] += jnp.sum(x, axis=-1)
            max_acc[...] = jnp.maximum(max_acc[...], jnp.max(x, axis=-1))

        @pl.when(k == last)
        def _acc_tail():
            lane = jax.lax.broadcasted_iota(jnp.int32, x.shape, dimension=2)
            valid = (k * hw_block + lane) < hw_total
            sum_acc[...] += jnp.sum(jnp.where(valid, x, 0.0), axis=-1)
            max_acc[...] = jnp.maximum(
                max_acc[...], jnp.max(jnp.where(valid, x, -jnp.inf), axis=-1))
    else:
        sum_acc[...] += jnp.sum(x, axis=-1)
        max_acc[...] = jnp.maximum(max_acc[...], jnp.max(x, axis=-1))

    @pl.when(k == last)
    def _finalize():
        _mlp_and_store(sum_acc[...] * (1.0 / hw_total), max_acc[...],
                       w1t_ref, b1_ref, w2t_ref, b2_ref, o_ref)


def _vmem_capacity_bytes():
    try:
        cap = getattr(pltpu.get_tpu_info(), "vmem_capacity_bytes", None)
        if cap:
            return int(cap)
    except Exception:
        pass
    return 64 * 1024 * 1024  # conservative default (v7x per-TensorCore)


def channel_attention(x, w1, b1, w2, b2, *, batch_block=8, weight_dtype=None,
                      vmem_x_buffer_bytes=None):
    """ChannelAttention forward.

    x: (N, C, H, W).  w1: (C//2, C), b1: (C//2,), w2: (C, C//2), b2: (C,)
    (1x1-conv weights squeezed to 2-D).  Returns (N, C, 1, 1) float32.
    """
    N, C, H, W = x.shape
    HW = H * W
    H1 = w1.shape[0]  # C // 2

    # Batch block: NB == N for small batches (legal: equals the full dim), or a
    # multiple of 8 otherwise.  Capping at 8 keeps grid_n >= 2 for N > 8 so the
    # "parallel" batch axis can shard across v7x's two TensorCores.
    NB = min(N, batch_block)
    if NB != N and NB % 8 != 0:
        NB = 8
    grid_n = pl.cdiv(N, NB)

    x_flat = x.reshape(N, C, HW)
    w_dt = weight_dtype if weight_dtype is not None else w1.dtype
    w1t = jnp.transpose(w1).astype(w_dt)      # (C, H1)  lane axis = H1
    w2t = jnp.transpose(w2).astype(w_dt)      # (H1, C)  lane axis = C
    b1r = b1.reshape(1, H1).astype(jnp.float32)
    b2r = b2.reshape(1, C).astype(jnp.float32)

    itemsize = jnp.dtype(x.dtype).itemsize
    w_itemsize = jnp.dtype(w_dt).itemsize

    # ---- generation-aware VMEM budget ------------------------------------
    vmem_cap = _vmem_capacity_bytes()
    # ~75% of physical VMEM: ≈96 MiB on v5e/v6e (128 MiB), ≈48 MiB on v7x (64 MiB).
    vmem_limit = min((vmem_cap * 3) // 4, 100 * 1024 * 1024)

    # Fixed VMEM residents.  Weights are requested single-buffered, but budget
    # for the double-buffered fallback so neither path can OOM.
    weight_vmem = 2 * (2 * C * H1 * w_itemsize + (H1 + C) * 4)
    out_vmem = 2 * NB * C * 4
    scratch_vmem = 2 * NB * C * 4
    slack = 2 * 1024 * 1024

    if vmem_x_buffer_bytes is None:
        budget_x = max(
            (vmem_limit - weight_vmem - out_vmem - scratch_vmem - slack) // 2, 0)
    else:
        budget_x = int(vmem_x_buffer_bytes)
    max_thw = budget_x // (NB * C * itemsize)

    if HW <= max_thw:
        THW = HW                                   # one contiguous DMA per block
        grid_k = 1
    else:
        THW = max((max_thw // 128) * 128, 128)     # lane-aligned spatial tile
        grid_k = pl.cdiv(HW, THW)
    mask_tail = (grid_k * THW) != HW

    # Never let the 128-lane floor (or a caller override) silently exceed the
    # scoped limit: raise it (capped at physical VMEM) instead of OOM-ing.
    needed = (2 * NB * C * THW * itemsize + weight_vmem + out_vmem
              + scratch_vmem + slack)
    if needed > vmem_limit:
        vmem_limit = min(needed, vmem_cap)

    single_tile = (grid_k == 1) and not mask_tail

    if single_tile:
        kernel = functools.partial(_ca_single_tile_kernel, hw_total=HW)
        grid = (grid_n,)
        x_spec = pl.BlockSpec((NB, C, HW), lambda n: (n, 0, 0))
        out_spec = pl.BlockSpec((NB, C), lambda n: (n, 0))
        scratch = []
        dim_sem = ("parallel",)
    else:
        kernel = functools.partial(_ca_tiled_kernel, hw_total=HW, hw_block=THW,
                                   mask_tail=mask_tail)
        grid = (grid_n, grid_k)
        x_spec = pl.BlockSpec((NB, C, THW), lambda n, k: (n, 0, k))
        out_spec = pl.BlockSpec((NB, C), lambda n, k: (n, 0))
        scratch = [pltpu.VMEM((NB, C), jnp.float32),   # running sum
                   pltpu.VMEM((NB, C), jnp.float32)]   # running max
        dim_sem = ("parallel", "arbitrary")

    def _call(single_buffer_weights):
        def const_spec(shape):
            idx = lambda *_: (0,) * len(shape)
            if single_buffer_weights:
                # Constant block -> no need for double buffering (saves VMEM).
                return pl.BlockSpec(shape, idx, pipeline_mode=pl.Buffered(1))
            return pl.BlockSpec(shape, idx)

        return pl.pallas_call(
            kernel,
            out_shape=jax.ShapeDtypeStruct((N, C), jnp.float32),
            grid_spec=pltpu.PrefetchScalarGridSpec(
                num_scalar_prefetch=0,
                grid=grid,
                in_specs=[
                    x_spec,                      # x tile
                    const_spec((C, H1)),         # fc1 weight^T
                    const_spec((1, H1)),         # fc1 bias
                    const_spec((H1, C)),         # fc2 weight^T
                    const_spec((1, C)),          # fc2 bias
                ],
                out_specs=out_spec,              # lane-dense (NB, C)
                scratch_shapes=scratch,
            ),
            compiler_params=pltpu.CompilerParams(
                dimension_semantics=dim_sem,
                vmem_limit_bytes=int(vmem_limit),
            ),
        )(x_flat, w1t, b1r, w2t, b2r)

    try:
        out = _call(True)        # single-buffered constant weights
    except Exception:
        out = _call(False)       # fallback: default double-buffering

    return out.reshape(N, C, 1, 1)


def channel_attention_ref(x, w1, b1, w2, b2):
    """Pure-JAX reference mirroring the PyTorch forward."""
    xf = x.astype(jnp.float32)
    avg = jnp.mean(xf, axis=(2, 3))  # (N, C)
    mx = jnp.max(xf, axis=(2, 3))    # (N, C)

    def mlp(p):  # (N, C)
        h = jnp.maximum(p @ w1.T + b1, 0.0)  # (N, C//2)
        return h @ w2.T + b2                 # (N, C)

    out = jax.nn.sigmoid(mlp(avg) + mlp(mx))
    return out[:, :, None, None]


if __name__ == "__main__":
    key = jax.random.PRNGKey(0)
    kx, k1, k2, k3, k4, kx2, kx3 = jax.random.split(key, 7)

    C = 32          # in_planes
    H1 = C // 2
    w1 = jax.random.normal(k1, (H1, C), dtype=jnp.float32) * 0.1
    b1 = jax.random.normal(k2, (H1,), dtype=jnp.float32) * 0.1
    w2 = jax.random.normal(k3, (C, H1), dtype=jnp.float32) * 0.1
    b2 = jax.random.normal(k4, (C,), dtype=jnp.float32) * 0.1

    # --- Test 1: small case, specialized single-tile path (grid_k == 1) ------
    N, H, W = 2, 16, 16
    x = jax.random.normal(kx, (N, C, H, W), dtype=jnp.float32)
    out = jax.block_until_ready(channel_attention(x, w1, b1, w2, b2))
    ref = channel_attention_ref(x, w1, b1, w2, b2)
    assert out.shape == (N, C, 1, 1), out.shape
    assert jnp.allclose(out, ref, atol=1e-5, rtol=1e-5), \
        float(jnp.max(jnp.abs(out - ref)))

    # --- Test 2: forced tiled path with masked (ragged) HW tail --------------
    # HW = 17*17 = 289 with a 1-byte x budget -> THW = 128, 3 HW tiles, last masked.
    x2 = jax.random.normal(kx2, (3, C, 17, 17), dtype=jnp.float32)
    out2 = jax.block_until_ready(
        channel_attention(x2, w1, b1, w2, b2, vmem_x_buffer_bytes=1))
    ref2 = channel_attention_ref(x2, w1, b1, w2, b2)
    assert out2.shape == (3, C, 1, 1), out2.shape
    assert jnp.allclose(out2, ref2, atol=1e-5, rtol=1e-5), \
        float(jnp.max(jnp.abs(out2 - ref2)))

    # --- Test 3: ragged batch blocks (N = 12, NB = 8 -> last block partial) ---
    x3 = jax.random.normal(kx3, (12, C, 8, 8), dtype=jnp.float32)
    out3 = jax.block_until_ready(channel_attention(x3, w1, b1, w2, b2))
    ref3 = channel_attention_ref(x3, w1, b1, w2, b2)
    assert out3.shape == (12, C, 1, 1), out3.shape
    assert jnp.allclose(out3, ref3, atol=1e-5, rtol=1e-5), \
        float(jnp.max(jnp.abs(out3 - ref3)))

    # --- Test 4: opt-in bf16 weights (halved weight VMEM/HBM, f32 accumulate) -
    out4 = jax.block_until_ready(
        channel_attention(x, w1, b1, w2, b2, weight_dtype=jnp.bfloat16))
    assert out4.shape == (N, C, 1, 1), out4.shape
    assert jnp.allclose(out4, ref, atol=5e-2, rtol=5e-2), \
        float(jnp.max(jnp.abs(out4 - ref)))

    print("KERNEL_OK")
</pallas_src>

<mosaic_0001>
module attributes {stable_mosaic.version = 11 : i64} {
  func.func @_ca_single_tile_kernel(%arg0: i32, %arg1: memref<2x32x256xf32, #tpu.memory_space<vmem>>, %arg2: memref<32x16xf32, #tpu.memory_space<vmem>>, %arg3: memref<1x16xf32, #tpu.memory_space<vmem>>, %arg4: memref<16x32xf32, #tpu.memory_space<vmem>>, %arg5: memref<1x32xf32, #tpu.memory_space<vmem>>, %arg6: memref<2x32xf32, #tpu.memory_space<vmem>>) attributes {dimension_semantics = [#tpu.dimension_semantics<parallel>], iteration_bounds = array<i64: 1>, scalar_prefetch = 0 : i64, scratch_operands = 0 : i64, tpu.core_type = #tpu.core_type<tc>, window_params = [{transform_indices = @transform_0, window_bounds = array<i64: 2, 32, 256>}, {pipeline_mode = #tpu.pipeline_mode<synchronous>, transform_indices = @transform_1, window_bounds = array<i64: 32, 16>}, {pipeline_mode = #tpu.pipeline_mode<synchronous>, transform_indices = @transform_2, window_bounds = array<i64: 1, 16>}, {pipeline_mode = #tpu.pipeline_mode<synchronous>, transform_indices = @transform_3, window_bounds = array<i64: 16, 32>}, {pipeline_mode = #tpu.pipeline_mode<synchronous>, transform_indices = @transform_4, window_bounds = array<i64: 1, 32>}, {transform_indices = @transform_5, window_bounds = array<i64: 2, 32>}]} {
    %c0 = arith.constant 0 : index
    %c0_0 = arith.constant 0 : index
    %c0_1 = arith.constant 0 : index
    %0 = vector.load %arg1[%c0, %c0_0, %c0_1] : memref<2x32x256xf32, #tpu.memory_space<vmem>>, vector<2x32x256xf32>
    %cst = arith.constant dense<0.000000e+00> : vector<2x32xf32>
    %1 = vector.multi_reduction <add>, %0, %cst [2] : vector<2x32x256xf32> to vector<2x32xf32>
    %cst_2 = arith.constant 3.906250e-03 : f32
    %2 = vector.broadcast %cst_2 : f32 to vector<2x32xf32>
    %3 = arith.mulf %1, %2 : vector<2x32xf32>
    %cst_3 = arith.constant dense<0xFF800000> : vector<2x32xf32>
    %4 = vector.multi_reduction <maximumf>, %0, %cst_3 [2] : vector<2x32x256xf32> to vector<2x32xf32>
    %5 = tpu.concatenate %3, %4 in 0 : vector<2x32xf32>, vector<2x32xf32> -> vector<4x32xf32>
    %c0_4 = arith.constant 0 : index
    %c0_5 = arith.constant 0 : index
    %6 = vector.load %arg2[%c0_4, %c0_5] : memref<32x16xf32, #tpu.memory_space<vmem>>, vector<32x16xf32>
    %cst_6 = arith.constant dense<0.000000e+00> : vector<4x16xf32>
    %7 = tpu.matmul %5, %6, %cst_6 {dimension_numbers = #tpu.dot_dimension_numbers<[1], [0], [0], [1], [0, 0, 1, 1], [], []>} : vector<4x32xf32>, vector<32x16xf32>, vector<4x16xf32> -> vector<4x16xf32>
    %c0_7 = arith.constant 0 : index
    %c0_8 = arith.constant 0 : index
    %8 = vector.load %arg3[%c0_7, %c0_8] : memref<1x16xf32, #tpu.memory_space<vmem>>, vector<1x16xf32>
    %9 = vector.broadcast %8 : vector<1x16xf32> to vector<4x16xf32>
    %10 = arith.addf %7, %9 : vector<4x16xf32>
    %cst_9 = arith.constant 0.000000e+00 : f32
    %11 = vector.broadcast %cst_9 : f32 to vector<4x16xf32>
    %12 = arith.maximumf %10, %11 : vector<4x16xf32>
    %c0_10 = arith.constant 0 : index
    %c0_11 = arith.constant 0 : index
    %13 = vector.load %arg4[%c0_10, %c0_11] : memref<16x32xf32, #tpu.memory_space<vmem>>, vector<16x32xf32>
    %cst_12 = arith.constant dense<0.000000e+00> : vector<4x32xf32>
    %14 = tpu.matmul %12, %13, %cst_12 {dimension_numbers = #tpu.dot_dimension_numbers<[1], [0], [0], [1], [0, 0, 1, 1], [], []>} : vector<4x16xf32>, vector<16x32xf32>, vector<4x32xf32> -> vector<4x32xf32>
    %c0_13 = arith.constant 0 : index
    %c0_14 = arith.constant 0 : index
    %15 = vector.load %arg5[%c0_13, %c0_14] : memref<1x32xf32, #tpu.memory_space<vmem>>, vector<1x32xf32>
    %16 = vector.broadcast %15 : vector<1x32xf32> to vector<4x32xf32>
    %17 = arith.addf %14, %16 : vector<4x32xf32>
    %18 = vector.extract_strided_slice %17 {offsets = [0, 0], sizes = [2, 32], strides = [1, 1]} : vector<4x32xf32> to vector<2x32xf32>
    %19 = vector.extract_strided_slice %17 {offsets = [2, 0], sizes = [2, 32], strides = [1, 1]} : vector<4x32xf32> to vector<2x32xf32>
    %20 = arith.addf %18, %19 : vector<2x32xf32>
    %21 = arith.negf %20 : vector<2x32xf32>
    %22 = math.exp %21 : vector<2x32xf32>
    %cst_15 = arith.constant 1.000000e+00 : f32
    %23 = vector.broadcast %cst_15 : f32 to vector<2x32xf32>
    %24 = arith.addf %23, %22 : vector<2x32xf32>
    %25 = arith.divf %23, %24 : vector<2x32xf32>
    %c0_16 = arith.constant 0 : index
    %c0_17 = arith.constant 0 : index
    %26 = vector.load %arg6[%c0_16, %c0_17] : memref<2x32xf32, #tpu.memory_space<vmem>>, vector<2x32xf32>
    tpu.vector_store %arg6[%c0_16, %c0_17], %25 {strides = array<i32>} : memref<2x32xf32, #tpu.memory_space<vmem>>, vector<2x32xf32>,
    return
  }
  func.func @transform_0(%arg0: i32) -> (i32, i32, i32) {
    %c0_i32 = arith.constant 0 : i32
    %c0_i32_0 = arith.constant 0 : i32
    %c0_i32_1 = arith.constant 0 : i32
    return %arg0, %c0_i32, %c0_i32_0 : i32, i32, i32
  }
  func.func @transform_1(%arg0: i32) -> (i32, i32) {
    %c0_i32 = arith.constant 0 : i32
    %c0_i32_0 = arith.constant 0 : i32
    %c0_i32_1 = arith.constant 0 : i32
    return %c0_i32, %c0_i32_0 : i32, i32
  }
  func.func @transform_2(%arg0: i32) -> (i32, i32) {
    %c0_i32 = arith.constant 0 : i32
    %c0_i32_0 = arith.constant 0 : i32
    %c0_i32_1 = arith.constant 0 : i32
    return %c0_i32, %c0_i32_0 : i32, i32
  }
  func.func @transform_3(%arg0: i32) -> (i32, i32) {
    %c0_i32 = arith.constant 0 : i32
    %c0_i32_0 = arith.constant 0 : i32
    %c0_i32_1 = arith.constant 0 : i32
    return %c0_i32, %c0_i32_0 : i32, i32
  }
  func.func @transform_4(%arg0: i32) -> (i32, i32) {
    %c0_i32 = arith.constant 0 : i32
    %c0_i32_0 = arith.constant 0 : i32
    %c0_i32_1 = arith.constant 0 : i32
    return %c0_i32, %c0_i32_0 : i32, i32
  }
  func.func @transform_5(%arg0: i32) -> (i32, i32) {
    %c0_i32 = arith.constant 0 : i32
    %c0_i32_0 = arith.constant 0 : i32
    return %arg0, %c0_i32 : i32, i32
  }
}

module attributes {stable_mosaic.version = 11 : i64} {
  func.func @_ca_single_tile_kernel(%arg0: i32, %arg1: memref<2x32x256xf32, #tpu.memory_space<vmem>>, %arg2: memref<32x16xf32, #tpu.memory_space<vmem>>, %arg3: memref<1x16xf32, #tpu.memory_space<vmem>>, %arg4: memref<16x32xf32, #tpu.memory_space<vmem>>, %arg5: memref<1x32xf32, #tpu.memory_space<vmem>>, %arg6: memref<2x32xf32, #tpu.memory_space<vmem>>) attributes {dimension_semantics = [#tpu.dimension_semantics<parallel>], iteration_bounds = array<i64: 1>, scalar_prefetch = 0 : i64, scratch_operands = 0 : i64, tpu.core_type = #tpu.core_type<tc>, window_params = [{transform_indices = @transform_0, window_bounds = array<i64: 2, 32, 256>}, {pipeline_mode = #tpu.pipeline_mode<synchronous>, transform_indices = @transform_1, window_bounds = array<i64: 32, 16>}, {pipeline_mode = #tpu.pipeline_mode<synchronous>, transform_indices = @transform_2, window_bounds = array<i64: 1, 16>}, {pipeline_mode = #tpu.pipeline_mode<synchronous>, transform_indices = @transform_3, window_bounds = array<i64: 16, 32>}, {pipeline_mode = #tpu.pipeline_mode<synchronous>, transform_indices = @transform_4, window_bounds = array<i64: 1, 32>}, {transform_indices = @transform_5, window_bounds = array<i64: 2, 32>}]} {
    %c0 = arith.constant 0 : index
    %c0_0 = arith.constant 0 : index
    %c0_1 = arith.constant 0 : index
    %0 = vector.load %arg1[%c0, %c0_0, %c0_1] : memref<2x32x256xf32, #tpu.memory_space<vmem>>, vector<2x32x256xf32>
    %cst = arith.constant dense<0.000000e+00> : vector<2x32xf32>
    %1 = vector.multi_reduction <add>, %0, %cst [2] : vector<2x32x256xf32> to vector<2x32xf32>
    %cst_2 = arith.constant 3.906250e-03 : f32
    %2 = vector.broadcast %cst_2 : f32 to vector<2x32xf32>
    %3 = arith.mulf %1, %2 : vector<2x32xf32>
    %cst_3 = arith.constant dense<0xFF800000> : vector<2x32xf32>
    %4 = vector.multi_reduction <maximumf>, %0, %cst_3 [2] : vector<2x32x256xf32> to vector<2x32xf32>
    %5 = tpu.concatenate %3, %4 in 0 : vector<2x32xf32>, vector<2x32xf32> -> vector<4x32xf32>
    %c0_4 = arith.constant 0 : index
    %c0_5 = arith.constant 0 : index
    %6 = vector.load %arg2[%c0_4, %c0_5] : memref<32x16xf32, #tpu.memory_space<vmem>>, vector<32x16xf32>
    %cst_6 = arith.constant dense<0.000000e+00> : vector<4x16xf32>
    %7 = tpu.matmul %5, %6, %cst_6 {dimension_numbers = #tpu.dot_dimension_numbers<[1], [0], [0], [1], [0, 0, 1, 1], [], []>} : vector<4x32xf32>, vector<32x16xf32>, vector<4x16xf32> -> vector<4x16xf32>
    %c0_7 = arith.constant 0 : index
    %c0_8 = arith.constant 0 : index
    %8 = vector.load %arg3[%c0_7, %c0_8] : memref<1x16xf32, #tpu.memory_space<vmem>>, vector<1x16xf32>
    %9 = vector.broadcast %8 : vector<1x16xf32> to vector<4x16xf32>
    %10 = arith.addf %7, %9 : vector<4x16xf32>
    %cst_9 = arith.constant 0.000000e+00 : f32
    %11 = vector.broadcast %cst_9 : f32 to vector<4x16xf32>
    %12 = arith.maximumf %10, %11 : vector<4x16xf32>
    %c0_10 = arith.constant 0 : index
    %c0_11 = arith.constant 0 : index
    %13 = vector.load %arg4[%c0_10, %c0_11] : memref<16x32xf32, #tpu.memory_space<vmem>>, vector<16x32xf32>
    %cst_12 = arith.constant dense<0.000000e+00> : vector<4x32xf32>
    %14 = tpu.matmul %12, %13, %cst_12 {dimension_numbers = #tpu.dot_dimension_numbers<[1], [0], [0], [1], [0, 0, 1, 1], [], []>} : vector<4x16xf32>, vector<16x32xf32>, vector<4x32xf32> -> vector<4x32xf32>
    %c0_13 = arith.constant 0 : index
    %c0_14 = arith.constant 0 : index
    %15 = vector.load %arg5[%c0_13, %c0_14] : memref<1x32xf32, #tpu.memory_space<vmem>>, vector<1x32xf32>
    %16 = vector.broadcast %15 : vector<1x32xf32> to vector<4x32xf32>
    %17 = arith.addf %14, %16 : vector<4x32xf32>
    %18 = vector.extract_strided_slice %17 {offsets = [0, 0], sizes = [2, 32], strides = [1, 1]} : vector<4x32xf32> to vector<2x32xf32>
    %19 = vector.extract_strided_slice %17 {offsets = [2, 0], sizes = [2, 32], strides = [1, 1]} : vector<4x32xf32> to vector<2x32xf32>
    %20 = arith.addf %18, %19 : vector<2x32xf32>
    %21 = arith.negf %20 : vector<2x32xf32>
    %22 = math.exp %21 : vector<2x32xf32>
    %cst_15 = arith.constant 1.000000e+00 : f32
    %23 = vector.broadcast %cst_15 : f32 to vector<2x32xf32>
    %24 = arith.addf %23, %22 : vector<2x32xf32>
    %25 = arith.divf %23, %24 : vector<2x32xf32>
    %c0_16 = arith.constant 0 : index
    %c0_17 = arith.constant 0 : index
    %26 = vector.load %arg6[%c0_16, %c0_17] : memref<2x32xf32, #tpu.memory_space<vmem>>, vector<2x32xf32>
    tpu.vector_store %arg6[%c0_16, %c0_17], %25 {strides = array<i32>} : memref<2x32xf32, #tpu.memory_space<vmem>>, vector<2x32xf32>,
    return
  }
  func.func @transform_0(%arg0: i32) -> (i32, i32, i32) {
    %c0_i32 = arith.constant 0 : i32
    %c0_i32_0 = arith.constant 0 : i32
    %c0_i32_1 = arith.constant 0 : i32
    return %arg0, %c0_i32, %c0_i32_0 : i32, i32, i32
  }
  func.func @transform_1(%arg0: i32) -> (i32, i32) {
    %c0_i32 = arith.constant 0 : i32
    %c0_i32_0 = arith.constant 0 : i32
    %c0_i32_1 = arith.constant 0 : i32
    return %c0_i32, %c0_i32_0 : i32, i32
  }
  func.func @transform_2(%arg0: i32) -> (i32, i32) {
    %c0_i32 = arith.constant 0 : i32
    %c0_i32_0 = arith.constant 0 : i32
    %c0_i32_1 = arith.constant 0 : i32
    return %c0_i32, %c0_i32_0 : i32, i32
  }
  func.func @transform_3(%arg0: i32) -> (i32, i32) {
    %c0_i32 = arith.constant 0 : i32
    %c0_i32_0 = arith.constant 0 : i32
    %c0_i32_1 = arith.constant 0 : i32
    return %c0_i32, %c0_i32_0 : i32, i32
  }
  func.func @transform_4(%arg0: i32) -> (i32, i32) {
    %c0_i32 = arith.constant 0 : i32
    %c0_i32_0 = arith.constant 0 : i32
    %c0_i32_1 = arith.constant 0 : i32
    return %c0_i32, %c0_i32_0 : i32, i32
  }
  func.func @transform_5(%arg0: i32) -> (i32, i32) {
    %c0_i32 = arith.constant 0 : i32
    %c0_i32_0 = arith.constant 0 : i32
    return %arg0, %c0_i32 : i32, i32
  }
}

</mosaic_0001>

<llo_original>
// kernel: tpu_custom_call.1
$region0: #{tpu_custom_call.1}
  #allocation0 [shape = 'u32[]', space=smem, size = 0x4, offset = 0x4, fixed_abs, tag = 'smem constant byte address 0x4 - core index']
  #allocation1 [shape = 'u32[144,128]{1,0:T(1,128)}', space=vmem, size = 0x12000, scoped, tag = 'internal scratch']
  %s0 = inlined_call_operand.hbm [shape: f32[2,32,256], index: 0, kind: input, shape index: {}]
  %s1 = inlined_call_operand.vmem [shape: f32[32,16], index: 1, kind: input, shape index: {}]
  %s2 = inlined_call_operand.vmem [shape: f32[1,16], index: 2, kind: input, shape index: {}]
  %s3 = inlined_call_operand.vmem [shape: f32[16,32], index: 3, kind: input, shape index: {}]
  %s4 = inlined_call_operand.vmem [shape: f32[1,32], index: 4, kind: input, shape index: {}]
  %s5 = inlined_call_operand.hbm [shape: f32[2,32], index: 5, kind: output, shape index: {}]
  %s6 = sld [smem:[#allocation0]]
  $region34: #{tpu_custom_call.1} parent=0
    _
  %s8 = ssub.s32 1, %s6
  %s9 = scalar_select 0, %s8, %s6
  $region1: #{tpu_custom_call.1} parent=0
    #allocation2 [shape = 'u8[65536]{0}', space=vmem, size = 0x10000, scoped, tag = 'input window, operand 0, single buffered']
    #allocation3 [shape = 's32[1]{0}', space=sflag, size = 0x4, scoped, tag = 'scoped memory for tpu_custom_call.1']
    #allocation4 [shape = 's32[1]{0}', space=sflag, size = 0x4, scoped, tag = 'scoped memory for tpu_custom_call.1']
    #allocation5 [shape = 'u8[1024]{0}', space=vmem, size = 0x400, scoped, tag = 'output window, operand 0, single buffered']
    %10 = vsyncpa [#allocation3], 0
    %11 = vsyncpa [#allocation4], 0
    // Predicated region
    $region2: #{tpu_custom_call.1} parent=1 // pred_check
      _
    $region3: #{tpu_custom_call.1} parent=1 // pred_check_branch
      %13 = sbr.rel (0) target = $region5
    $region4: #{tpu_custom_call.1} parent=1 // pred_region
      %s15 = ssub.s32 2048, 2048
      %16 = vsyncadd [#allocation3], %s15
      %s17 = sshll.u32 [#allocation2], 4
      %s18 = int_to_ptr.vmem [resolvable:$true] %s17
      %23 = dma.hbm_to_vmem [thread:$0]  %s0, 2048, %s18, [#allocation3], 256, 256, 16
    $region5: #{tpu_custom_call.1} parent=1 // pred_fallthru
      _
    // Predicated region
    $region6: #{tpu_custom_call.1} parent=1 // pred_check
      _
    $region7: #{tpu_custom_call.1} parent=1 // pred_check_branch
      %25 = sbr.rel (0) target = $region9
    $region8: #{tpu_custom_call.1} parent=1 // pred_region
      _
    $region9: #{tpu_custom_call.1} parent=1 // pred_fallthru
      _
    // Predicated region
    $region10: #{tpu_custom_call.1} parent=1 // pred_check
      _
    $region11: #{tpu_custom_call.1} parent=1 // pred_check_branch
      %27 = sbr.rel (0) target = $region13
    $region12: #{tpu_custom_call.1} parent=1 // pred_region
      _
    $region13: #{tpu_custom_call.1} parent=1 // pred_fallthru
      _
    // Predicated region
    $region14: #{tpu_custom_call.1} parent=1 // pred_check
      _
    $region15: #{tpu_custom_call.1} parent=1 // pred_check_branch
      %29 = sbr.rel (0) target = $region17
    $region16: #{tpu_custom_call.1} parent=1 // pred_region
      _
    $region17: #{tpu_custom_call.1} parent=1 // pred_fallthru
      _
    // Predicated region
    $region18: #{tpu_custom_call.1} parent=1 // pred_check
      _
    $region19: #{tpu_custom_call.1} parent=1 // pred_check_branch
      %31 = sbr.rel (0) target = $region21
    $region20: #{tpu_custom_call.1} parent=1 // pred_region
      _
    $region21: #{tpu_custom_call.1} parent=1 // pred_fallthru
      _
    // Predicated region
    $region22: #{tpu_custom_call.1} parent=1 // pred_check
      _
    $region23: #{tpu_custom_call.1} parent=1 // pred_check_branch
      %33 = sbr.rel (0) target = $region25
    $region24: #{tpu_custom_call.1} parent=1 // pred_region
      %34 = dma.done [#allocation3], 2048
    $region25: #{tpu_custom_call.1} parent=1 // pred_fallthru
      _
    %v35 = vld [vmem:[#allocation2] sm:$0xff]
    %v36 = vld [vmem:[#allocation2 + $0x8] sm:$0xff]
    %v37 = vld [vmem:[#allocation2 + $0x10] sm:$0xff]
    %v38 = vld [vmem:[#allocation2 + $0x18] sm:$0xff]
    %v39 = vld [vmem:[#allocation2 + $0x20] sm:$0xff]
    %v40 = vld [vmem:[#allocation2 + $0x28] sm:$0xff]
    %v41 = vld [vmem:[#allocation2 + $0x30] sm:$0xff]
    %v42 = vld [vmem:[#allocation2 + $0x38] sm:$0xff]
    %v43 = vld [vmem:[#allocation2 + $0x40] sm:$0xff]
    %v44 = vld [vmem:[#allocation2 + $0x48] sm:$0xff]
    %v45 = vld [vmem:[#allocation2 + $0x50] sm:$0xff]
    %v46 = vld [vmem:[#allocation2 + $0x58] sm:$0xff]
    %v47 = vld [vmem:[#allocation2 + $0x60] sm:$0xff]
    %v48 = vld [vmem:[#allocation2 + $0x68] sm:$0xff]
    %v49 = vld [vmem:[#allocation2 + $0x70] sm:$0xff]
    %v50 = vld [vmem:[#allocation2 + $0x78] sm:$0xff]
    %v51 = vadd.f32 %v35, %v36
    %52 = vadd.xlane.f32.xlu0 %v51
    %v53 = vpop.xlane.xlu0 %52
    %v54 = vadd.f32 %v37, %v38
    %55 = vadd.xlane.f32.xlu0 %v54
    %v56 = vpop.xlane.xlu0 %55
    %v57 = vadd.f32 %v39, %v40
    %58 = vadd.xlane.f32.xlu0 %v57
    %v59 = vpop.xlane.xlu0 %58
    %v60 = vadd.f32 %v41, %v42
    %61 = vadd.xlane.f32.xlu0 %v60
    %v62 = vpop.xlane.xlu0 %61
    %v63 = vadd.f32 %v43, %v44
    %64 = vadd.xlane.f32.xlu0 %v63
    %v65 = vpop.xlane.xlu0 %64
    %v66 = vadd.f32 %v45, %v46
    %67 = vadd.xlane.f32.xlu0 %v66
    %v68 = vpop.xlane.xlu0 %67
    %v69 = vadd.f32 %v47, %v48
    %70 = vadd.xlane.f32.xlu0 %v69
    %v71 = vpop.xlane.xlu0 %70
    %v72 = vadd.f32 %v49, %v50
    %73 = vadd.xlane.f32.xlu0 %v72
    %v74 = vpop.xlane.xlu0 %73
    %v75 = vmul.f32 %v53, 0.00390625
    %v76 = vmul.f32 %v56, 0.00390625
    %v77 = vmul.f32 %v59, 0.00390625
    %v78 = vmul.f32 %v62, 0.00390625
    %v79 = vmul.f32 %v65, 0.00390625
    %v80 = vmul.f32 %v68, 0.00390625
    %v81 = vmul.f32 %v71, 0.00390625
    %v82 = vmul.f32 %v74, 0.00390625
    %v83 = vmax.f32 %v35, %v36
    %84 = vmax.xlane.f32.xlu0 %v83
    %v85 = vpop.xlane.xlu0 %84
    %v86 = vmax.f32 %v37, %v38
    %87 = vmax.xlane.f32.xlu0 %v86
    %v88 = vpop.xlane.xlu0 %87
    %v89 = vmax.f32 %v39, %v40
    %90 = vmax.xlane.f32.xlu0 %v89
    %v91 = vpop.xlane.xlu0 %90
    %v92 = vmax.f32 %v41, %v42
    %93 = vmax.xlane.f32.xlu0 %v92
    %v94 = vpop.xlane.xlu0 %93
    %v95 = vmax.f32 %v43, %v44
    %96 = vmax.xlane.f32.xlu0 %v95
    %v97 = vpop.xlane.xlu0 %96
    %v98 = vmax.f32 %v45, %v46
    %99 = vmax.xlane.f32.xlu0 %v98
    %v100 = vpop.xlane.xlu0 %99
    %v101 = vmax.f32 %v47, %v48
    %102 = vmax.xlane.f32.xlu0 %v101
    %v103 = vpop.xlane.xlu0 %102
    %v104 = vmax.f32 %v49, %v50
    %105 = vmax.xlane.f32.xlu0 %v104
    %v106 = vpop.xlane.xlu0 %105
    %v115 = vlaneseq
    %v116 = vand.u32 %v115, 127
    %v117 = vlaneseq
    %v118 = vshrl.u32 %v117, 7
    %v119 = vsub.s32 %v116, %v118
    %v120 = vrot.slane %v75, %v119
    %v121 = vadd.s32 %v116, 4294967288
    %v122 = vlaneseq
    %v123 = vshrl.u32 %v122, 7
    %v124 = vsub.s32 %v121, %v123
    %v125 = vrot.slane %v76, %v124
    %vm126 = vcmask 130112
    %v127 = vsel %vm126, %v125, %v120
    %v128 = vadd.s32 %v116, 4294967280
    %v129 = vlaneseq
    %v130 = vshrl.u32 %v129, 7
    %v131 = vsub.s32 %v128, %v130
    %v132 = vrot.slane %v77, %v131
    %vm133 = vcmask 195712
    %v134 = vsel %vm133, %v132, %v127
    %v135 = vadd.s32 %v116, 4294967272
    %v136 = vlaneseq
    %v137 = vshrl.u32 %v136, 7
    %v138 = vsub.s32 %v135, %v137
    %v139 = vrot.slane %v78, %v138
    %vm140 = vcmask 261312
    %v141 = vsel %vm140, %v139, %v134
    %v142 = vlaneseq
    %v143 = vshrl.u32 %v142, 7
    %v144 = vsub.s32 %v116, %v143
    %v145 = vrot.slane %v79, %v144
    %v146 = vlaneseq
    %v147 = vshrl.u32 %v146, 7
    %v148 = vsub.s32 %v121, %v147
    %v149 = vrot.slane %v80, %v148
    %v150 = vsel %vm126, %v149, %v145
    %v151 = vlaneseq
    %v152 = vshrl.u32 %v151, 7
    %v153 = vsub.s32 %v128, %v152
    %v154 = vrot.slane %v81, %v153
    %v155 = vsel %vm133, %v154, %v150
    %v156 = vlaneseq
    %v157 = vshrl.u32 %v156, 7
    %v158 = vsub.s32 %v135, %v157
    %v159 = vrot.slane %v82, %v158
    %v160 = vsel %vm140, %v159, %v155
    %vm161 = vcmask 1041409
    %v162 = vsel %vm161, %v160, %v141
    %v172 = vlaneseq
    %v173 = vshrl.u32 %v172, 7
    %v174 = vsub.s32 %v116, %v173
    %v175 = vrot.slane %v85, %v174
    %v176 = vlaneseq
    %v177 = vshrl.u32 %v176, 7
    %v178 = vsub.s32 %v121, %v177
    %v179 = vrot.slane %v88, %v178
    %v180 = vsel %vm126, %v179, %v175
    %v181 = vlaneseq
    %v182 = vshrl.u32 %v181, 7
    %v183 = vsub.s32 %v128, %v182
    %v184 = vrot.slane %v91, %v183
    %v185 = vsel %vm133, %v184, %v180
    %v186 = vlaneseq
    %v187 = vshrl.u32 %v186, 7
    %v188 = vsub.s32 %v135, %v187
    %v189 = vrot.slane %v94, %v188
    %v190 = vsel %vm140, %v189, %v185
    %v191 = vlaneseq
    %v192 = vshrl.u32 %v191, 7
    %v193 = vsub.s32 %v116, %v192
    %v194 = vrot.slane %v97, %v193
    %v195 = vlaneseq
    %v196 = vshrl.u32 %v195, 7
    %v197 = vsub.s32 %v121, %v196
    %v198 = vrot.slane %v100, %v197
    %v199 = vsel %vm126, %v198, %v194
    %v200 = vlaneseq
    %v201 = vshrl.u32 %v200, 7
    %v202 = vsub.s32 %v128, %v201
    %v203 = vrot.slane %v103, %v202
    %v204 = vsel %vm133, %v203, %v199
    %v205 = vlaneseq
    %v206 = vshrl.u32 %v205, 7
    %v207 = vsub.s32 %v135, %v206
    %v208 = vrot.slane %v106, %v207
    %v209 = vsel %vm140, %v208, %v204
    %vm210 = vcmask 1043459
    %v211 = vsel %vm210, %v209, %v190
    %vm213 = vcmask 1041408
    %v214 = vsel %vm213, %v162, %v211
    %v215 = vld [vmem:[%s1] sm:$0xff]
    %v216 = vld [vmem:[%s1 + $0x8] sm:$0xff]
    %v217 = vld [vmem:[%s1 + $0x10] sm:$0xff]
    %v218 = vld [vmem:[%s1 + $0x18] sm:$0xff]
    %v219 = vld [vmem:[%s2] sm:$0x1]
    %v221 = vlaneseq
    %v222 = vshrl.u32 %v221, 7
    %v223 = vsub.s32 0, %v222
    %v224 = vrot.slane %v219, %v223
    %vm226 = vcmask 261120
    %v228 = vsel %vm226, %v214, 0
    %230 = vmatprep.subr.mxu0 0.0
    %231 = vmatpush1.msra.mxu0 0.0
    %232 = vmatprep.subr.mxu0 0.0
    %233 = vmatpush1.msra.mxu0 0.0
    %234 = vmatprep.subr.mxu0 0.0
    %235 = vmatpush1.msra.mxu0 0.0
    %236 = vmatprep.subr.mxu0 0.0
    %237 = vmatpush1.msra.mxu0 0.0
    %238 = vmatprep.subr.mxu0 0.0
    %239 = vmatpush1.msra.mxu0 0.0
    %240 = vmatprep.subr.mxu0 0.0
    %241 = vmatpush1.msra.mxu0 0.0
    %242 = vmatprep.subr.mxu0 0.0
    %243 = vmatpush1.msra.mxu0 0.0
    %244 = vmatprep.subr.mxu0 0.0
    %245 = vmatpush1.msra.mxu0 0.0
    %246 = vmatprep.subr.mxu0 0.0
    %247 = vmatpush1.msra.mxu0 0.0
    %248 = vmatprep.subr.mxu0 0.0
    %249 = vmatpush1.msra.mxu0 0.0
    %250 = vmatprep.subr.mxu0 0.0
    %251 = vmatpush1.msra.mxu0 0.0
    %252 = vmatprep.subr.mxu0 0.0
    %253 = vmatpush1.msra.mxu0 0.0
    %254 = vmatprep.subr.mxu0 0.0
    %255 = vmatpush1.msra.mxu0 %v218
    %256 = vmatprep.subr.mxu0 0.0
    %257 = vmatpush1.msra.mxu0 %v217
    %258 = vmatprep.subr.mxu0 0.0
    %259 = vmatpush1.msra.mxu0 %v216
    %260 = vmatprep.subr.mxu0 0.0
    %261 = vmatpush1.msra.mxu0 %v215
    %262 = vmatprep.subr.mxu0 0.0
    %263 = vmatpush2.msra.mxu0 0.0
    %264 = vmatprep.subr.mxu0 0.0
    %265 = vmatpush2.msra.mxu0 0.0
    %266 = vmatprep.subr.mxu0 0.0
    %267 = vmatpush2.msra.mxu0 0.0
    %268 = vmatprep.subr.mxu0 0.0
    %269 = vmatpush2.msra.mxu0 0.0
    %270 = vmatprep.subr.mxu0 0.0
    %271 = vmatpush2.msra.mxu0 0.0
    %272 = vmatprep.subr.mxu0 0.0
    %273 = vmatpush2.msra.mxu0 0.0
    %274 = vmatprep.subr.mxu0 0.0
    %275 = vmatpush2.msra.mxu0 0.0
    %276 = vmatprep.subr.mxu0 0.0
    %277 = vmatpush2.msra.mxu0 0.0
    %278 = vmatprep.subr.mxu0 0.0
    %279 = vmatpush2.msra.mxu0 0.0
    %280 = vmatprep.subr.mxu0 0.0
    %281 = vmatpush2.msra.mxu0 0.0
    %282 = vmatprep.subr.mxu0 0.0
    %283 = vmatpush2.msra.mxu0 0.0
    %284 = vmatprep.subr.mxu0 0.0
    %285 = vmatpush2.msra.mxu0 0.0
    %286 = vmatprep.subr.mxu0 0.0
    %287 = vmatpush2.msra.mxu0 0.0
    %288 = vmatprep.subr.mxu0 0.0
    %289 = vmatpush2.msra.mxu0 0.0
    %290 = vmatprep.subr.mxu0 0.0
    %291 = vmatpush2.msra.mxu0 0.0
    %292 = vmatprep.subr.mxu0 0.0
    %293 = vmatpush2.msra.mxu0 0.0
    %294 = vmatprep.mubr.f32.mxu0 0.0
    %295 = vmatmul.mubr.f32.gmra.mxu0 %v228
    %v296 = vpop.f32.mrf.mxu0
    %v297 = vadd.f32 %v224, %v296
    %v298 = vpop.f32.mrf.mxu0
    %299 = vdwg.mxu0
    %v300 = vmax.f32 %v297, 0.0
    %v301 = vld [vmem:[%s3] sm:$0xff]
    %v302 = vld [vmem:[%s3 + $0x8] sm:$0xff]
    %v303 = vld [vmem:[%s4] sm:$0x1]
    %v305 = vlaneseq
    %v306 = vshrl.u32 %v305, 7
    %v307 = vsub.s32 0, %v306
    %v308 = vrot.slane %v303, %v307
    %vm310 = vcmask 130048
    %v312 = vsel %vm310, %v300, 0
    %314 = vmatprep.subr.mxu0 0.0
    %315 = vmatpush1.msra.mxu0 0.0
    %316 = vmatprep.subr.mxu0 0.0
    %317 = vmatpush1.msra.mxu0 0.0
    %318 = vmatprep.subr.mxu0 0.0
    %319 = vmatpush1.msra.mxu0 0.0
    %320 = vmatprep.subr.mxu0 0.0
    %321 = vmatpush1.msra.mxu0 0.0
    %322 = vmatprep.subr.mxu0 0.0
    %323 = vmatpush1.msra.mxu0 0.0
    %324 = vmatprep.subr.mxu0 0.0
    %325 = vmatpush1.msra.mxu0 0.0
    %326 = vmatprep.subr.mxu0 0.0
    %327 = vmatpush1.msra.mxu0 0.0
    %328 = vmatprep.subr.mxu0 0.0
    %329 = vmatpush1.msra.mxu0 0.0
    %330 = vmatprep.subr.mxu0 0.0
    %331 = vmatpush1.msra.mxu0 0.0
    %332 = vmatprep.subr.mxu0 0.0
    %333 = vmatpush1.msra.mxu0 0.0
    %334 = vmatprep.subr.mxu0 0.0
    %335 = vmatpush1.msra.mxu0 0.0
    %336 = vmatprep.subr.mxu0 0.0
    %337 = vmatpush1.msra.mxu0 0.0
    %338 = vmatprep.subr.mxu0 0.0
    %339 = vmatpush1.msra.mxu0 0.0
    %340 = vmatprep.subr.mxu0 0.0
    %341 = vmatpush1.msra.mxu0 0.0
    %342 = vmatprep.subr.mxu0 0.0
    %343 = vmatpush1.msra.mxu0 %v302
    %344 = vmatprep.subr.mxu0 0.0
    %345 = vmatpush1.msra.mxu0 %v301
    %346 = vmatprep.subr.mxu0 0.0
    %347 = vmatpush2.msra.mxu0 0.0
    %348 = vmatprep.subr.mxu0 0.0
    %349 = vmatpush2.msra.mxu0 0.0
    %350 = vmatprep.subr.mxu0 0.0
    %351 = vmatpush2.msra.mxu0 0.0
    %352 = vmatprep.subr.mxu0 0.0
    %353 = vmatpush2.msra.mxu0 0.0
    %354 = vmatprep.subr.mxu0 0.0
    %355 = vmatpush2.msra.mxu0 0.0
    %356 = vmatprep.subr.mxu0 0.0
    %357 = vmatpush2.msra.mxu0 0.0
    %358 = vmatprep.subr.mxu0 0.0
    %359 = vmatpush2.msra.mxu0 0.0
    %360 = vmatprep.subr.mxu0 0.0
    %361 = vmatpush2.msra.mxu0 0.0
    %362 = vmatprep.subr.mxu0 0.0
    %363 = vmatpush2.msra.mxu0 0.0
    %364 = vmatprep.subr.mxu0 0.0
    %365 = vmatpush2.msra.mxu0 0.0
    %366 = vmatprep.subr.mxu0 0.0
    %367 = vmatpush2.msra.mxu0 0.0
    %368 = vmatprep.subr.mxu0 0.0
    %369 = vmatpush2.msra.mxu0 0.0
    %370 = vmatprep.subr.mxu0 0.0
    %371 = vmatpush2.msra.mxu0 0.0
    %372 = vmatprep.subr.mxu0 0.0
    %373 = vmatpush2.msra.mxu0 0.0
    %374 = vmatprep.subr.mxu0 0.0
    %375 = vmatpush2.msra.mxu0 0.0
    %376 = vmatprep.subr.mxu0 0.0
    %377 = vmatpush2.msra.mxu0 0.0
    %378 = vmatprep.mubr.f32.mxu0 0.0
    %379 = vmatmul.mubr.f32.gmra.mxu0 %v312
    %v380 = vpop.f32.mrf.mxu0
    %v381 = vadd.f32 %v308, %v380
    %v382 = vpop.f32.mrf.mxu0
    %383 = vdwg.mxu0
    %v385 = vrot.slane %v381, 2
    %v387 = vadd.f32 %v381, %v385
    %v388 = vxor.u32 %v387, 2147483648
    %v389 = vmul.f32 %v388, 1.442695
    %v390 = vpow.pop %v389
    %v391 = vadd.f32 %v390, 1.0
    %v392 = vrcp.pop %v391
    %v393 = vmul.f32 1.0, %v392
    %vm394 = vcmask 254976
    %395 = vst.msk [vmem:[#allocation5] sm:$0x3] %vm394, %v393
    // Predicated region
    $region26: #{tpu_custom_call.1} parent=1 // pred_check
      _
    $region27: #{tpu_custom_call.1} parent=1 // pred_check_branch
      %397 = sbr.rel (0) target = $region29
    $region28: #{tpu_custom_call.1} parent=1 // pred_region
      %s399 = ssub.s32 32, 32
      %400 = vsyncadd [#allocation4], %s399
      %s402 = sshll.u32 [#allocation5], 4
      %s403 = int_to_ptr.vmem [resolvable:$true] %s402
      %405 = dma.vmem_to_hbm [thread:$0]  %s403, 32, %s5, [#allocation4]
    $region29: #{tpu_custom_call.1} parent=1 // pred_fallthru
      _
    // Predicated region
    $region30: #{tpu_custom_call.1} parent=1 // pred_check
      _
    $region31: #{tpu_custom_call.1} parent=1 // pred_check_branch
      %407 = sbr.rel (0) target = $region33
    $region32: #{tpu_custom_call.1} parent=1 // pred_region
      %408 = dma.done [#allocation4], 32
    $region33: #{tpu_custom_call.1} parent=1 // pred_fallthru
      _
    %409 = vsyncpa [#allocation3], 1
    %410 = vsyncpa [#allocation4], 1

// kernel: tpu_custom_call.1
$region0: #{tpu_custom_call.1}
  #allocation0 [shape = 'u32[]', space=smem, size = 0x4, offset = 0x4, fixed_abs, tag = 'smem constant byte address 0x4 - core index']
  #allocation1 [shape = 'u32[144,128]{1,0:T(1,128)}', space=vmem, size = 0x12000, scoped, tag = 'internal scratch']
  %s0 = inlined_call_operand.hbm [shape: f32[2,32,256], index: 0, kind: input, shape index: {}]
  %s1 = inlined_call_operand.vmem [shape: f32[32,16], index: 1, kind: input, shape index: {}]
  %s2 = inlined_call_operand.vmem [shape: f32[1,16], index: 2, kind: input, shape index: {}]
  %s3 = inlined_call_operand.vmem [shape: f32[16,32], index: 3, kind: input, shape index: {}]
  %s4 = inlined_call_operand.vmem [shape: f32[1,32], index: 4, kind: input, shape index: {}]
  %s5 = inlined_call_operand.hbm [shape: f32[2,32], index: 5, kind: output, shape index: {}]
  %s6 = sld [smem:[#allocation0]]
  $region34: #{tpu_custom_call.1} parent=0
    _
  %s8 = ssub.s32 1, %s6
  %s9 = scalar_select 0, %s8, %s6
  $region1: #{tpu_custom_call.1} parent=0
    #allocation2 [shape = 'u8[65536]{0}', space=vmem, size = 0x10000, scoped, tag = 'input window, operand 0, single buffered']
    #allocation3 [shape = 's32[1]{0}', space=sflag, size = 0x4, scoped, tag = 'scoped memory for tpu_custom_call.1']
    #allocation4 [shape = 's32[1]{0}', space=sflag, size = 0x4, scoped, tag = 'scoped memory for tpu_custom_call.1']
    #allocation5 [shape = 'u8[1024]{0}', space=vmem, size = 0x400, scoped, tag = 'output window, operand 0, single buffered']
    %10 = vsyncpa [#allocation3], 0
    %11 = vsyncpa [#allocation4], 0
    // Predicated region
    $region2: #{tpu_custom_call.1} parent=1 // pred_check
      _
    $region3: #{tpu_custom_call.1} parent=1 // pred_check_branch
      %13 = sbr.rel (0) target = $region5
    $region4: #{tpu_custom_call.1} parent=1 // pred_region
      %s15 = ssub.s32 2048, 2048
      %16 = vsyncadd [#allocation3], %s15
      %s17 = sshll.u32 [#allocation2], 4
      %s18 = int_to_ptr.vmem [resolvable:$true] %s17
      %23 = dma.hbm_to_vmem [thread:$0]  %s0, 2048, %s18, [#allocation3], 256, 256, 16
    $region5: #{tpu_custom_call.1} parent=1 // pred_fallthru
      _
    // Predicated region
    $region6: #{tpu_custom_call.1} parent=1 // pred_check
      _
    $region7: #{tpu_custom_call.1} parent=1 // pred_check_branch
      %25 = sbr.rel (0) target = $region9
    $region8: #{tpu_custom_call.1} parent=1 // pred_region
      _
    $region9: #{tpu_custom_call.1} parent=1 // pred_fallthru
      _
    // Predicated region
    $region10: #{tpu_custom_call.1} parent=1 // pred_check
      _
    $region11: #{tpu_custom_call.1} parent=1 // pred_check_branch
      %27 = sbr.rel (0) target = $region13
    $region12: #{tpu_custom_call.1} parent=1 // pred_region
      _
    $region13: #{tpu_custom_call.1} parent=1 // pred_fallthru
      _
    // Predicated region
    $region14: #{tpu_custom_call.1} parent=1 // pred_check
      _
    $region15: #{tpu_custom_call.1} parent=1 // pred_check_branch
      %29 = sbr.rel (0) target = $region17
    $region16: #{tpu_custom_call.1} parent=1 // pred_region
      _
    $region17: #{tpu_custom_call.1} parent=1 // pred_fallthru
      _
    // Predicated region
    $region18: #{tpu_custom_call.1} parent=1 // pred_check
      _
    $region19: #{tpu_custom_call.1} parent=1 // pred_check_branch
      %31 = sbr.rel (0) target = $region21
    $region20: #{tpu_custom_call.1} parent=1 // pred_region
      _
    $region21: #{tpu_custom_call.1} parent=1 // pred_fallthru
      _
    // Predicated region
    $region22: #{tpu_custom_call.1} parent=1 // pred_check
      _
    $region23: #{tpu_custom_call.1} parent=1 // pred_check_branch
      %33 = sbr.rel (0) target = $region25
    $region24: #{tpu_custom_call.1} parent=1 // pred_region
      %34 = dma.done [#allocation3], 2048
    $region25: #{tpu_custom_call.1} parent=1 // pred_fallthru
      _
    %v35 = vld [vmem:[#allocation2] sm:$0xff]
    %v36 = vld [vmem:[#allocation2 + $0x8] sm:$0xff]
    %v37 = vld [vmem:[#allocation2 + $0x10] sm:$0xff]
    %v38 = vld [vmem:[#allocation2 + $0x18] sm:$0xff]
    %v39 = vld [vmem:[#allocation2 + $0x20] sm:$0xff]
    %v40 = vld [vmem:[#allocation2 + $0x28] sm:$0xff]
    %v41 = vld [vmem:[#allocation2 + $0x30] sm:$0xff]
    %v42 = vld [vmem:[#allocation2 + $0x38] sm:$0xff]
    %v43 = vld [vmem:[#allocation2 + $0x40] sm:$0xff]
    %v44 = vld [vmem:[#allocation2 + $0x48] sm:$0xff]
    %v45 = vld [vmem:[#allocation2 + $0x50] sm:$0xff]
    %v46 = vld [vmem:[#allocation2 + $0x58] sm:$0xff]
    %v47 = vld [vmem:[#allocation2 + $0x60] sm:$0xff]
    %v48 = vld [vmem:[#allocation2 + $0x68] sm:$0xff]
    %v49 = vld [vmem:[#allocation2 + $0x70] sm:$0xff]
    %v50 = vld [vmem:[#allocation2 + $0x78] sm:$0xff]
    %v51 = vadd.f32 %v35, %v36
    %52 = vadd.xlane.f32.xlu0 %v51
    %v53 = vpop.xlane.xlu0 %52
    %v54 = vadd.f32 %v37, %v38
    %55 = vadd.xlane.f32.xlu0 %v54
    %v56 = vpop.xlane.xlu0 %55
    %v57 = vadd.f32 %v39, %v40
    %58 = vadd.xlane.f32.xlu0 %v57
    %v59 = vpop.xlane.xlu0 %58
    %v60 = vadd.f32 %v41, %v42
    %61 = vadd.xlane.f32.xlu0 %v60
    %v62 = vpop.xlane.xlu0 %61
    %v63 = vadd.f32 %v43, %v44
    %64 = vadd.xlane.f32.xlu0 %v63
    %v65 = vpop.xlane.xlu0 %64
    %v66 = vadd.f32 %v45, %v46
    %67 = vadd.xlane.f32.xlu0 %v66
    %v68 = vpop.xlane.xlu0 %67
    %v69 = vadd.f32 %v47, %v48
    %70 = vadd.xlane.f32.xlu0 %v69
    %v71 = vpop.xlane.xlu0 %70
    %v72 = vadd.f32 %v49, %v50
    %73 = vadd.xlane.f32.xlu0 %v72
    %v74 = vpop.xlane.xlu0 %73
    %v75 = vmul.f32 %v53, 0.00390625
    %v76 = vmul.f32 %v56, 0.00390625
    %v77 = vmul.f32 %v59, 0.00390625
    %v78 = vmul.f32 %v62, 0.00390625
    %v79 = vmul.f32 %v65, 0.00390625
    %v80 = vmul.f32 %v68, 0.00390625
    %v81 = vmul.f32 %v71, 0.00390625
    %v82 = vmul.f32 %v74, 0.00390625
    %v83 = vmax.f32 %v35, %v36
    %84 = vmax.xlane.f32.xlu0 %v83
    %v85 = vpop.xlane.xlu0 %84
    %v86 = vmax.f32 %v37, %v38
    %87 = vmax.xlane.f32.xlu0 %v86
    %v88 = vpop.xlane.xlu0 %87
    %v89 = vmax.f32 %v39, %v40
    %90 = vmax.xlane.f32.xlu0 %v89
    %v91 = vpop.xlane.xlu0 %90
    %v92 = vmax.f32 %v41, %v42
    %93 = vmax.xlane.f32.xlu0 %v92
    %v94 = vpop.xlane.xlu0 %93
    %v95 = vmax.f32 %v43, %v44
    %96 = vmax.xlane.f32.xlu0 %v95
    %v97 = vpop.xlane.xlu0 %96
    %v98 = vmax.f32 %v45, %v46
    %99 = vmax.xlane.f32.xlu0 %v98
    %v100 = vpop.xlane.xlu0 %99
    %v101 = vmax.f32 %v47, %v48
    %102 = vmax.xlane.f32.xlu0 %v101
    %v103 = vpop.xlane.xlu0 %102
    %v104 = vmax.f32 %v49, %v50
    %105 = vmax.xlane.f32.xlu0 %v104
    %v106 = vpop.xlane.xlu0 %105
    %v115 = vlaneseq
    %v116 = vand.u32 %v115, 127
    %v117 = vlaneseq
    %v118 = vshrl.u32 %v117, 7
    %v119 = vsub.s32 %v116, %v118
    %v120 = vrot.slane %v75, %v119
    %v121 = vadd.s32 %v116, 4294967288
    %v122 = vlaneseq
    %v123 = vshrl.u32 %v122, 7
    %v124 = vsub.s32 %v121, %v123
    %v125 = vrot.slane %v76, %v124
    %vm126 = vcmask 130112
    %v127 = vsel %vm126, %v125, %v120
    %v128 = vadd.s32 %v116, 4294967280
    %v129 = vlaneseq
    %v130 = vshrl.u32 %v129, 7
    %v131 = vsub.s32 %v128, %v130
    %v132 = vrot.slane %v77, %v131
    %vm133 = vcmask 195712
    %v134 = vsel %vm133, %v132, %v127
    %v135 = vadd.s32 %v116, 4294967272
    %v136 = vlaneseq
    %v137 = vshrl.u32 %v136, 7
    %v138 = vsub.s32 %v135, %v137
    %v139 = vrot.slane %v78, %v138
    %vm140 = vcmask 261312
    %v141 = vsel %vm140, %v139, %v134
    %v142 = vlaneseq
    %v143 = vshrl.u32 %v142, 7
    %v144 = vsub.s32 %v116, %v143
    %v145 = vrot.slane %v79, %v144
    %v146 = vlaneseq
    %v147 = vshrl.u32 %v146, 7
    %v148 = vsub.s32 %v121, %v147
    %v149 = vrot.slane %v80, %v148
    %v150 = vsel %vm126, %v149, %v145
    %v151 = vlaneseq
    %v152 = vshrl.u32 %v151, 7
    %v153 = vsub.s32 %v128, %v152
    %v154 = vrot.slane %v81, %v153
    %v155 = vsel %vm133, %v154, %v150
    %v156 = vlaneseq
    %v157 = vshrl.u32 %v156, 7
    %v158 = vsub.s32 %v135, %v157
    %v159 = vrot.slane %v82, %v158
    %v160 = vsel %vm140, %v159, %v155
    %vm161 = vcmask 1041409
    %v162 = vsel %vm161, %v160, %v141
    %v172 = vlaneseq
    %v173 = vshrl.u32 %v172, 7
    %v174 = vsub.s32 %v116, %v173
    %v175 = vrot.slane %v85, %v174
    %v176 = vlaneseq
    %v177 = vshrl.u32 %v176, 7
    %v178 = vsub.s32 %v121, %v177
    %v179 = vrot.slane %v88, %v178
    %v180 = vsel %vm126, %v179, %v175
    %v181 = vlaneseq
    %v182 = vshrl.u32 %v181, 7
    %v183 = vsub.s32 %v128, %v182
    %v184 = vrot.slane %v91, %v183
    %v185 = vsel %vm133, %v184, %v180
    %v186 = vlaneseq
    %v187 = vshrl.u32 %v186, 7
    %v188 = vsub.s32 %v135, %v187
    %v189 = vrot.slane %v94, %v188
    %v190 = vsel %vm140, %v189, %v185
    %v191 = vlaneseq
    %v192 = vshrl.u32 %v191, 7
    %v193 = vsub.s32 %v116, %v192
    %v194 = vrot.slane %v97, %v193
    %v195 = vlaneseq
    %v196 = vshrl.u32 %v195, 7
    %v197 = vsub.s32 %v121, %v196
    %v198 = vrot.slane %v100, %v197
    %v199 = vsel %vm126, %v198, %v194
    %v200 = vlaneseq
    %v201 = vshrl.u32 %v200, 7
    %v202 = vsub.s32 %v128, %v201
    %v203 = vrot.slane %v103, %v202
    %v204 = vsel %vm133, %v203, %v199
    %v205 = vlaneseq
    %v206 = vshrl.u32 %v205, 7
    %v207 = vsub.s32 %v135, %v206
    %v208 = vrot.slane %v106, %v207
    %v209 = vsel %vm140, %v208, %v204
    %vm210 = vcmask 1043459
    %v211 = vsel %vm210, %v209, %v190
    %vm213 = vcmask 1041408
    %v214 = vsel %vm213, %v162, %v211
    %v215 = vld [vmem:[%s1] sm:$0xff]
    %v216 = vld [vmem:[%s1 + $0x8] sm:$0xff]
    %v217 = vld [vmem:[%s1 + $0x10] sm:$0xff]
    %v218 = vld [vmem:[%s1 + $0x18] sm:$0xff]
    %v219 = vld [vmem:[%s2] sm:$0x1]
    %v221 = vlaneseq
    %v222 = vshrl.u32 %v221, 7
    %v223 = vsub.s32 0, %v222
    %v224 = vrot.slane %v219, %v223
    %vm226 = vcmask 261120
    %v228 = vsel %vm226, %v214, 0
    %230 = vmatprep.subr.mxu0 0.0
    %231 = vmatpush1.msra.mxu0 0.0
    %232 = vmatprep.subr.mxu0 0.0
    %233 = vmatpush1.msra.mxu0 0.0
    %234 = vmatprep.subr.mxu0 0.0
    %235 = vmatpush1.msra.mxu0 0.0
    %236 = vmatprep.subr.mxu0 0.0
    %237 = vmatpush1.msra.mxu0 0.0
    %238 = vmatprep.subr.mxu0 0.0
    %239 = vmatpush1.msra.mxu0 0.0
    %240 = vmatprep.subr.mxu0 0.0
    %241 = vmatpush1.msra.mxu0 0.0
    %242 = vmatprep.subr.mxu0 0.0
    %243 = vmatpush1.msra.mxu0 0.0
    %244 = vmatprep.subr.mxu0 0.0
    %245 = vmatpush1.msra.mxu0 0.0
    %246 = vmatprep.subr.mxu0 0.0
    %247 = vmatpush1.msra.mxu0 0.0
    %248 = vmatprep.subr.mxu0 0.0
    %249 = vmatpush1.msra.mxu0 0.0
    %250 = vmatprep.subr.mxu0 0.0
    %251 = vmatpush1.msra.mxu0 0.0
    %252 = vmatprep.subr.mxu0 0.0
    %253 = vmatpush1.msra.mxu0 0.0
    %254 = vmatprep.subr.mxu0 0.0
    %255 = vmatpush1.msra.mxu0 %v218
    %256 = vmatprep.subr.mxu0 0.0
    %257 = vmatpush1.msra.mxu0 %v217
    %258 = vmatprep.subr.mxu0 0.0
    %259 = vmatpush1.msra.mxu0 %v216
    %260 = vmatprep.subr.mxu0 0.0
    %261 = vmatpush1.msra.mxu0 %v215
    %262 = vmatprep.subr.mxu0 0.0
    %263 = vmatpush2.msra.mxu0 0.0
    %264 = vmatprep.subr.mxu0 0.0
    %265 = vmatpush2.msra.mxu0 0.0
    %266 = vmatprep.subr.mxu0 0.0
    %267 = vmatpush2.msra.mxu0 0.0
    %268 = vmatprep.subr.mxu0 0.0
    %269 = vmatpush2.msra.mxu0 0.0
    %270 = vmatprep.subr.mxu0 0.0
    %271 = vmatpush2.msra.mxu0 0.0
    %272 = vmatprep.subr.mxu0 0.0
    %273 = vmatpush2.msra.mxu0 0.0
    %274 = vmatprep.subr.mxu0 0.0
    %275 = vmatpush2.msra.mxu0 0.0
    %276 = vmatprep.subr.mxu0 0.0
    %277 = vmatpush2.msra.mxu0 0.0
    %278 = vmatprep.subr.mxu0 0.0
    %279 = vmatpush2.msra.mxu0 0.0
    %280 = vmatprep.subr.mxu0 0.0
    %281 = vmatpush2.msra.mxu0 0.0
    %282 = vmatprep.subr.mxu0 0.0
    %283 = vmatpush2.msra.mxu0 0.0
    %284 = vmatprep.subr.mxu0 0.0
    %285 = vmatpush2.msra.mxu0 0.0
    %286 = vmatprep.subr.mxu0 0.0
    %287 = vmatpush2.msra.mxu0 0.0
    %288 = vmatprep.subr.mxu0 0.0
    %289 = vmatpush2.msra.mxu0 0.0
    %290 = vmatprep.subr.mxu0 0.0
    %291 = vmatpush2.msra.mxu0 0.0
    %292 = vmatprep.subr.mxu0 0.0
    %293 = vmatpush2.msra.mxu0 0.0
    %294 = vmatprep.mubr.f32.mxu0 0.0
    %295 = vmatmul.mubr.f32.gmra.mxu0 %v228
    %v296 = vpop.f32.mrf.mxu0
    %v297 = vadd.f32 %v224, %v296
    %v298 = vpop.f32.mrf.mxu0
    %299 = vdwg.mxu0
    %v300 = vmax.f32 %v297, 0.0
    %v301 = vld [vmem:[%s3] sm:$0xff]
    %v302 = vld [vmem:[%s3 + $0x8] sm:$0xff]
    %v303 = vld [vmem:[%s4] sm:$0x1]
    %v305 = vlaneseq
    %v306 = vshrl.u32 %v305, 7
    %v307 = vsub.s32 0, %v306
    %v308 = vrot.slane %v303, %v307
    %vm310 = vcmask 130048
    %v312 = vsel %vm310, %v300, 0
    %314 = vmatprep.subr.mxu0 0.0
    %315 = vmatpush1.msra.mxu0 0.0
    %316 = vmatprep.subr.mxu0 0.0
    %317 = vmatpush1.msra.mxu0 0.0
    %318 = vmatprep.subr.mxu0 0.0
    %319 = vmatpush1.msra.mxu0 0.0
    %320 = vmatprep.subr.mxu0 0.0
    %321 = vmatpush1.msra.mxu0 0.0
    %322 = vmatprep.subr.mxu0 0.0
    %323 = vmatpush1.msra.mxu0 0.0
    %324 = vmatprep.subr.mxu0 0.0
    %325 = vmatpush1.msra.mxu0 0.0
    %326 = vmatprep.subr.mxu0 0.0
    %327 = vmatpush1.msra.mxu0 0.0
    %328 = vmatprep.subr.mxu0 0.0
    %329 = vmatpush1.msra.mxu0 0.0
    %330 = vmatprep.subr.mxu0 0.0
    %331 = vmatpush1.msra.mxu0 0.0
    %332 = vmatprep.subr.mxu0 0.0
    %333 = vmatpush1.msra.mxu0 0.0
    %334 = vmatprep.subr.mxu0 0.0
    %335 = vmatpush1.msra.mxu0 0.0
    %336 = vmatprep.subr.mxu0 0.0
    %337 = vmatpush1.msra.mxu0 0.0
    %338 = vmatprep.subr.mxu0 0.0
    %339 = vmatpush1.msra.mxu0 0.0
    %340 = vmatprep.subr.mxu0 0.0
    %341 = vmatpush1.msra.mxu0 0.0
    %342 = vmatprep.subr.mxu0 0.0
    %343 = vmatpush1.msra.mxu0 %v302
    %344 = vmatprep.subr.mxu0 0.0
    %345 = vmatpush1.msra.mxu0 %v301
    %346 = vmatprep.subr.mxu0 0.0
    %347 = vmatpush2.msra.mxu0 0.0
    %348 = vmatprep.subr.mxu0 0.0
    %349 = vmatpush2.msra.mxu0 0.0
    %350 = vmatprep.subr.mxu0 0.0
    %351 = vmatpush2.msra.mxu0 0.0
    %352 = vmatprep.subr.mxu0 0.0
    %353 = vmatpush2.msra.mxu0 0.0
    %354 = vmatprep.subr.mxu0 0.0
    %355 = vmatpush2.msra.mxu0 0.0
    %356 = vmatprep.subr.mxu0 0.0
    %357 = vmatpush2.msra.mxu0 0.0
    %358 = vmatprep.subr.mxu0 0.0
    %359 = vmatpush2.msra.mxu0 0.0
    %360 = vmatprep.subr.mxu0 0.0
    %361 = vmatpush2.msra.mxu0 0.0
    %362 = vmatprep.subr.mxu0 0.0
    %363 = vmatpush2.msra.mxu0 0.0
    %364 = vmatprep.subr.mxu0 0.0
    %365 = vmatpush2.msra.mxu0 0.0
    %366 = vmatprep.subr.mxu0 0.0
    %367 = vmatpush2.msra.mxu0 0.0
    %368 = vmatprep.subr.mxu0 0.0
    %369 = vmatpush2.msra.mxu0 0.0
    %370 = vmatprep.subr.mxu0 0.0
    %371 = vmatpush2.msra.mxu0 0.0
    %372 = vmatprep.subr.mxu0 0.0
    %373 = vmatpush2.msra.mxu0 0.0
    %374 = vmatprep.subr.mxu0 0.0
    %375 = vmatpush2.msra.mxu0 0.0
    %376 = vmatprep.subr.mxu0 0.0
    %377 = vmatpush2.msra.mxu0 0.0
    %378 = vmatprep.mubr.f32.mxu0 0.0
    %379 = vmatmul.mubr.f32.gmra.mxu0 %v312
    %v380 = vpop.f32.mrf.mxu0
    %v381 = vadd.f32 %v308, %v380
    %v382 = vpop.f32.mrf.mxu0
    %383 = vdwg.mxu0
    %v385 = vrot.slane %v381, 2
    %v387 = vadd.f32 %v381, %v385
    %v388 = vxor.u32 %v387, 2147483648
    %v389 = vmul.f32 %v388, 1.442695
    %v390 = vpow.pop %v389
    %v391 = vadd.f32 %v390, 1.0
    %v392 = vrcp.pop %v391
    %v393 = vmul.f32 1.0, %v392
    %vm394 = vcmask 254976
    %395 = vst.msk [vmem:[#allocation5] sm:$0x3] %vm394, %v393
    // Predicated region
    $region26: #{tpu_custom_call.1} parent=1 // pred_check
      _
    $region27: #{tpu_custom_call.1} parent=1 // pred_check_branch
      %397 = sbr.rel (0) target = $region29
    $region28: #{tpu_custom_call.1} parent=1 // pred_region
      %s399 = ssub.s32 32, 32
      %400 = vsyncadd [#allocation4], %s399
      %s402 = sshll.u32 [#allocation5], 4
      %s403 = int_to_ptr.vmem [resolvable:$true] %s402
      %405 = dma.vmem_to_hbm [thread:$0]  %s403, 32, %s5, [#allocation4]
    $region29: #{tpu_custom_call.1} parent=1 // pred_fallthru
      _
    // Predicated region
    $region30: #{tpu_custom_call.1} parent=1 // pred_check
      _
    $region31: #{tpu_custom_call.1} parent=1 // pred_check_branch
      %407 = sbr.rel (0) target = $region33
    $region32: #{tpu_custom_call.1} parent=1 // pred_region
      %408 = dma.done [#allocation4], 32
    $region33: #{tpu_custom_call.1} parent=1 // pred_fallthru
      _
    %409 = vsyncpa [#allocation3], 1
    %410 = vsyncpa [#allocation4], 1

</llo_original>
